<compile_context>
chip_gen: v7x
topology: tpu7x:2x2x1
jax: 0.10.0
libtpu: 0.0.40
codegen_flags: <defaults>
</compile_context>

<pallas_src>
import jax
import jax.numpy as jnp
from jax.experimental import pallas as pl
from jax.experimental.pallas import tpu as pltpu

LANE = 128  # TPU lane width (last block dim)


def iso_kernel(w_ref, x_ref, o_ref):
    # w_ref: (3, 3) scalar-prefetched into SMEM; x_ref / o_ref: (TB, 3, TR, 128) VMEM blocks.
    x0 = x_ref[:, 0]
    x1 = x_ref[:, 1]
    x2 = x_ref[:, 2]
    for c in range(3):  # unrolled at trace time -> 9 scalar-broadcast FMAs on the VPU
        y = w_ref[c, 0] * x0 + w_ref[c, 1] * x1 + w_ref[c, 2] * x2
        o_ref[:, c] = y.astype(o_ref.dtype)


def _round_up(a, m):
    return ((a + m - 1) // m) * m


def _isonet_pallas(x, w, *, tile_bytes=6 << 20):
    B, C, N = x.shape
    itemsize = jnp.dtype(x.dtype).itemsize
    assert itemsize in (1, 2, 4), "unsupported dtype for sublane packing"
    sub = {4: 8, 2: 16, 1: 32}[itemsize]  # sublane quantum for this dtype

    # Pad only to the next multiple of 128 lanes (NOT to a TR multiple); the last
    # row-tile block may be partial and its OOB stores are masked by Pallas.
    R = pl.cdiv(N, LANE)
    N_pad = R * LANE
    x_p = x if N_pad == N else jnp.pad(x, ((0, 0), (0, 0), (0, N_pad - N)))
    xr = x_p.reshape(B, C, R, LANE)  # contiguous view, no data movement

    # Byte-budgeted block: TB batches x TR rows of dense (.,128) slabs per channel.
    rows_budget = max(sub, tile_bytes // (C * LANE * itemsize))
    if R >= rows_budget:
        TR = max(sub, (rows_budget // sub) * sub)
        TB = 1
    else:
        TR = _round_up(R, sub)
        TB = max(1, min(B, rows_budget // TR))
    grid = (pl.cdiv(B, TB), pl.cdiv(R, TR))

    y = pl.pallas_call(
        iso_kernel,
        out_shape=jax.ShapeDtypeStruct((B, C, R, LANE), x.dtype),
        grid_spec=pltpu.PrefetchScalarGridSpec(
            num_scalar_prefetch=1,  # W lands in SMEM before the grid starts
            grid=grid,
            in_specs=[
                pl.BlockSpec((TB, C, TR, LANE), lambda bi, ri, w_ref: (bi, 0, ri, 0)),
            ],
            out_specs=pl.BlockSpec((TB, C, TR, LANE), lambda bi, ri, w_ref: (bi, 0, ri, 0)),
        ),
        compiler_params=pltpu.CompilerParams(
            dimension_semantics=("parallel", "parallel"),  # lets v7x use both TCs
            vmem_limit_bytes=28 << 20,  # ~24 MiB double-buffered blocks; raises v5e's 16 MiB default
        ),
        cost_estimate=pl.CostEstimate(
            flops=5 * B * C * N_pad,          # 3 mul + 2 add per output element
            transcendentals=0,
            bytes_accessed=2 * B * C * N_pad * itemsize,
        ),
    )(w, xr)

    y = y.reshape(B, C, N_pad)
    if N_pad != N:
        y = y[:, :, :N]
    return y


def isonet_forward(x, w, *, use_pallas=None):
    """x: (B, 3, N), w: (3, 3) (nn.Linear weight, out x in)."""
    B, C, N = x.shape
    assert C == 3 and w.shape == (C, C)
    if use_pallas is None:
        # Tiny inputs: kernel-call + grid-step overhead dwarfs the ~KB of HBM traffic.
        use_pallas = (B * N) >= (1 << 16)
    if not use_pallas:
        y = jnp.einsum("ck,bkn->bcn", w, x)
    else:
        y = _isonet_pallas(x, w)
    # TODO(synk): self.model is an arbitrary external submodule given to __init__
    # (not defined inside ISOnet); it is applied as identity here.
    return y


if __name__ == "__main__":
    key = jax.random.PRNGKey(0)
    kx, kw = jax.random.split(key)

    B, C, N = 2, 3, 1024  # small point cloud: batch=2, 3 coords, 1024 points
    x = jax.random.normal(kx, (B, C, N), dtype=jnp.float32)

    # Deterministic nn.Linear(3, 3, bias=False)-style init: U(-1/sqrt(in), 1/sqrt(in))
    bound = 1.0 / jnp.sqrt(jnp.float32(C))
    w = jax.random.uniform(kw, (C, C), dtype=jnp.float32, minval=-bound, maxval=bound)

    # Force the Pallas path so the kernel itself is exercised.
    y = jax.block_until_ready(isonet_forward(x, w, use_pallas=True))
    y_ref = jnp.einsum("ck,bkn->bcn", w, x)
    assert y.shape == (B, C, N)
    assert jnp.allclose(y, y_ref, atol=1e-5, rtol=1e-5), "mismatch vs reference"

    # Ragged path: N not a multiple of 128 -> partial last block, masked stores.
    N2 = 300
    x2 = jax.random.normal(kx, (B, C, N2), dtype=jnp.float32)
    y2 = jax.block_until_ready(isonet_forward(x2, w, use_pallas=True))
    assert jnp.allclose(y2, jnp.einsum("ck,bkn->bcn", w, x2), atol=1e-5, rtol=1e-5)

    # Larger case exercising the multi-tile / TB>1 block-budget logic.
    B3, N3 = 16, 8192
    x3 = jax.random.normal(kx, (B3, C, N3), dtype=jnp.float32)
    y3 = jax.block_until_ready(isonet_forward(x3, w, use_pallas=True))
    assert jnp.allclose(y3, jnp.einsum("ck,bkn->bcn", w, x3), atol=1e-5, rtol=1e-5)

    print("KERNEL_OK")
</pallas_src>

<mosaic_0001>
module attributes {stable_mosaic.version = 11 : i64} {
  func.func @iso_kernel(%arg0: i32, %arg1: i32, %arg2: memref<3x3xf32, #tpu.memory_space<smem>>, %arg3: memref<2x3x8x128xf32, #tpu.memory_space<vmem>>, %arg4: memref<2x3x8x128xf32, #tpu.memory_space<vmem>>) attributes {dimension_semantics = [#tpu.dimension_semantics<parallel>, #tpu.dimension_semantics<parallel>], iteration_bounds = array<i64: 1, 1>, scalar_prefetch = 1 : i64, scratch_operands = 0 : i64, tpu.core_type = #tpu.core_type<tc>, window_params = [{transform_indices = @transform_0, window_bounds = array<i64: 2, 3, 8, 128>}, {transform_indices = @transform_1, window_bounds = array<i64: 2, 3, 8, 128>}]} {
    %c0 = arith.constant 0 : index
    %c0_0 = arith.constant 0 : index
    %c0_1 = arith.constant 0 : index
    %c0_2 = arith.constant 0 : index
    %0 = vector.load %arg3[%c0, %c0_0, %c0_1, %c0_2] : memref<2x3x8x128xf32, #tpu.memory_space<vmem>>, vector<2x1x8x128xf32>
    %1 = vector.shape_cast %0 : vector<2x1x8x128xf32> to vector<2x8x128xf32>
    %c0_3 = arith.constant 0 : index
    %c1 = arith.constant 1 : index
    %c0_4 = arith.constant 0 : index
    %c0_5 = arith.constant 0 : index
    %2 = vector.load %arg3[%c0_3, %c1, %c0_4, %c0_5] : memref<2x3x8x128xf32, #tpu.memory_space<vmem>>, vector<2x1x8x128xf32>
    %3 = vector.shape_cast %2 : vector<2x1x8x128xf32> to vector<2x8x128xf32>
    %c0_6 = arith.constant 0 : index
    %c2 = arith.constant 2 : index
    %c0_7 = arith.constant 0 : index
    %c0_8 = arith.constant 0 : index
    %4 = vector.load %arg3[%c0_6, %c2, %c0_7, %c0_8] : memref<2x3x8x128xf32, #tpu.memory_space<vmem>>, vector<2x1x8x128xf32>
    %5 = vector.shape_cast %4 : vector<2x1x8x128xf32> to vector<2x8x128xf32>
    %c0_9 = arith.constant 0 : index
    %c0_10 = arith.constant 0 : index
    %6 = memref.load %arg2[%c0_9, %c0_10] : memref<3x3xf32, #tpu.memory_space<smem>>
    %7 = vector.broadcast %6 : f32 to vector<2x8x128xf32>
    %8 = arith.mulf %7, %1 : vector<2x8x128xf32>
    %c0_11 = arith.constant 0 : index
    %c1_12 = arith.constant 1 : index
    %9 = memref.load %arg2[%c0_11, %c1_12] : memref<3x3xf32, #tpu.memory_space<smem>>
    %10 = vector.broadcast %9 : f32 to vector<2x8x128xf32>
    %11 = arith.mulf %10, %3 : vector<2x8x128xf32>
    %12 = arith.addf %8, %11 : vector<2x8x128xf32>
    %c0_13 = arith.constant 0 : index
    %c2_14 = arith.constant 2 : index
    %13 = memref.load %arg2[%c0_13, %c2_14] : memref<3x3xf32, #tpu.memory_space<smem>>
    %14 = vector.broadcast %13 : f32 to vector<2x8x128xf32>
    %15 = arith.mulf %14, %5 : vector<2x8x128xf32>
    %16 = arith.addf %12, %15 : vector<2x8x128xf32>
    %c0_15 = arith.constant 0 : index
    %c0_16 = arith.constant 0 : index
    %c0_17 = arith.constant 0 : index
    %c0_18 = arith.constant 0 : index
    %17 = vector.load %arg4[%c0_15, %c0_16, %c0_17, %c0_18] : memref<2x3x8x128xf32, #tpu.memory_space<vmem>>, vector<2x1x8x128xf32>
    %18 = vector.shape_cast %17 : vector<2x1x8x128xf32> to vector<2x8x128xf32>
    %19 = vector.shape_cast %16 : vector<2x8x128xf32> to vector<2x1x8x128xf32>
    tpu.vector_store %arg4[%c0_15, %c0_16, %c0_17, %c0_18], %19 {strides = array<i32>} : memref<2x3x8x128xf32, #tpu.memory_space<vmem>>, vector<2x1x8x128xf32>,
    %c1_19 = arith.constant 1 : index
    %c0_20 = arith.constant 0 : index
    %20 = memref.load %arg2[%c1_19, %c0_20] : memref<3x3xf32, #tpu.memory_space<smem>>
    %21 = vector.broadcast %20 : f32 to vector<2x8x128xf32>
    %22 = arith.mulf %21, %1 : vector<2x8x128xf32>
    %c1_21 = arith.constant 1 : index
    %c1_22 = arith.constant 1 : index
    %23 = memref.load %arg2[%c1_21, %c1_22] : memref<3x3xf32, #tpu.memory_space<smem>>
    %24 = vector.broadcast %23 : f32 to vector<2x8x128xf32>
    %25 = arith.mulf %24, %3 : vector<2x8x128xf32>
    %26 = arith.addf %22, %25 : vector<2x8x128xf32>
    %c1_23 = arith.constant 1 : index
    %c2_24 = arith.constant 2 : index
    %27 = memref.load %arg2[%c1_23, %c2_24] : memref<3x3xf32, #tpu.memory_space<smem>>
    %28 = vector.broadcast %27 : f32 to vector<2x8x128xf32>
    %29 = arith.mulf %28, %5 : vector<2x8x128xf32>
    %30 = arith.addf %26, %29 : vector<2x8x128xf32>
    %c0_25 = arith.constant 0 : index
    %c1_26 = arith.constant 1 : index
    %c0_27 = arith.constant 0 : index
    %c0_28 = arith.constant 0 : index
    %31 = vector.load %arg4[%c0_25, %c1_26, %c0_27, %c0_28] : memref<2x3x8x128xf32, #tpu.memory_space<vmem>>, vector<2x1x8x128xf32>
    %32 = vector.shape_cast %31 : vector<2x1x8x128xf32> to vector<2x8x128xf32>
    %33 = vector.shape_cast %30 : vector<2x8x128xf32> to vector<2x1x8x128xf32>
    tpu.vector_store %arg4[%c0_25, %c1_26, %c0_27, %c0_28], %33 {strides = array<i32>} : memref<2x3x8x128xf32, #tpu.memory_space<vmem>>, vector<2x1x8x128xf32>,
    %c2_29 = arith.constant 2 : index
    %c0_30 = arith.constant 0 : index
    %34 = memref.load %arg2[%c2_29, %c0_30] : memref<3x3xf32, #tpu.memory_space<smem>>
    %35 = vector.broadcast %34 : f32 to vector<2x8x128xf32>
    %36 = arith.mulf %35, %1 : vector<2x8x128xf32>
    %c2_31 = arith.constant 2 : index
    %c1_32 = arith.constant 1 : index
    %37 = memref.load %arg2[%c2_31, %c1_32] : memref<3x3xf32, #tpu.memory_space<smem>>
    %38 = vector.broadcast %37 : f32 to vector<2x8x128xf32>
    %39 = arith.mulf %38, %3 : vector<2x8x128xf32>
    %40 = arith.addf %36, %39 : vector<2x8x128xf32>
    %c2_33 = arith.constant 2 : index
    %c2_34 = arith.constant 2 : index
    %41 = memref.load %arg2[%c2_33, %c2_34] : memref<3x3xf32, #tpu.memory_space<smem>>
    %42 = vector.broadcast %41 : f32 to vector<2x8x128xf32>
    %43 = arith.mulf %42, %5 : vector<2x8x128xf32>
    %44 = arith.addf %40, %43 : vector<2x8x128xf32>
    %c0_35 = arith.constant 0 : index
    %c2_36 = arith.constant 2 : index
    %c0_37 = arith.constant 0 : index
    %c0_38 = arith.constant 0 : index
    %45 = vector.load %arg4[%c0_35, %c2_36, %c0_37, %c0_38] : memref<2x3x8x128xf32, #tpu.memory_space<vmem>>, vector<2x1x8x128xf32>
    %46 = vector.shape_cast %45 : vector<2x1x8x128xf32> to vector<2x8x128xf32>
    %47 = vector.shape_cast %44 : vector<2x8x128xf32> to vector<2x1x8x128xf32>
    tpu.vector_store %arg4[%c0_35, %c2_36, %c0_37, %c0_38], %47 {strides = array<i32>} : memref<2x3x8x128xf32, #tpu.memory_space<vmem>>, vector<2x1x8x128xf32>,
    return
  }
  func.func @transform_0(%arg0: i32, %arg1: i32, %arg2: memref<3x3xf32, #tpu.memory_space<smem>>) -> (i32, i32, i32, i32) {
    %c0_i32 = arith.constant 0 : i32
    %c0_i32_0 = arith.constant 0 : i32
    %c0_i32_1 = arith.constant 0 : i32
    return %arg0, %c0_i32, %arg1, %c0_i32_0 : i32, i32, i32, i32
  }
  func.func @transform_1(%arg0: i32, %arg1: i32, %arg2: memref<3x3xf32, #tpu.memory_space<smem>>) -> (i32, i32, i32, i32) {
    %c0_i32 = arith.constant 0 : i32
    %c0_i32_0 = arith.constant 0 : i32
    %c0_i32_1 = arith.constant 0 : i32
    return %arg0, %c0_i32, %arg1, %c0_i32_0 : i32, i32, i32, i32
  }
}

</mosaic_0001>

<llo_original>
// kernel: tpu_custom_call.1
$region0: #{tpu_custom_call.1}
  #allocation0 [shape = 'u32[]', space=smem, size = 0x4, offset = 0x4, fixed_abs, tag = 'smem constant byte address 0x4 - core index']
  #allocation1 [shape = 'u32[144,128]{1,0:T(1,128)}', space=vmem, size = 0x12000, scoped, tag = 'internal scratch']
  #allocation2 [shape = 's32[1]{0}', space=sflag, size = 0x4, scoped, tag = 'scoped memory for tpu_custom_call.1']
  #allocation3 [shape = 'u8[2048]{0}', space=smem, size = 0x800, scoped, tag = 'prefetched SMEM operand 0']
  %s0 = inlined_call_operand.hbm [shape: f32[3,3], index: 0, kind: input, shape index: {}]
  %s1 = inlined_call_operand.hbm [shape: f32[2,3,8,128], index: 1, kind: input, shape index: {}]
  %s2 = inlined_call_operand.hbm [shape: f32[2,3,8,128], index: 2, kind: output, shape index: {}]
  %s3 = sld [smem:[#allocation0]]
  $region18: #{tpu_custom_call.1} parent=0
    _
  %s5 = ssub.s32 1, %s3
  %s6 = scalar_select 0, %s5, %s3
  %8 = dma.hbm_to_smem %s0, 64, [#allocation3], [#allocation2]
  %9 = dma.done [#allocation2], 64
  %10 = sfence
  $region1: #{tpu_custom_call.1} parent=0
    #allocation4 [shape = 'u8[24576]{0}', space=vmem, size = 0x6000, scoped, tag = 'input window, operand 1, single buffered']
    #allocation5 [shape = 's32[1]{0}', space=sflag, size = 0x4, scoped, tag = 'scoped memory for tpu_custom_call.1']
    #allocation6 [shape = 's32[1]{0}', space=sflag, size = 0x4, scoped, tag = 'scoped memory for tpu_custom_call.1']
    #allocation7 [shape = 'u8[24576]{0}', space=vmem, size = 0x6000, scoped, tag = 'output window, operand 0, single buffered']
    %11 = vsyncpa [#allocation5], 0
    %12 = vsyncpa [#allocation6], 0
    // Predicated region
    $region2: #{tpu_custom_call.1} parent=1 // pred_check
      _
    $region3: #{tpu_custom_call.1} parent=1 // pred_check_branch
      %14 = sbr.rel (0) target = $region5
    $region4: #{tpu_custom_call.1} parent=1 // pred_region
      %s16 = ssub.s32 768, 768
      %17 = vsyncadd [#allocation5], %s16
      %s18 = sshll.u32 [#allocation4], 4
      %s19 = int_to_ptr.vmem [resolvable:$true] %s18
      %24 = dma.hbm_to_vmem [thread:$0]  %s1, 768, %s19, [#allocation5], 128, 128, 8
    $region5: #{tpu_custom_call.1} parent=1 // pred_fallthru
      _
    // Predicated region
    $region6: #{tpu_custom_call.1} parent=1 // pred_check
      _
    $region7: #{tpu_custom_call.1} parent=1 // pred_check_branch
      %26 = sbr.rel (0) target = $region9
    $region8: #{tpu_custom_call.1} parent=1 // pred_region
      %27 = dma.done [#allocation5], 768
    $region9: #{tpu_custom_call.1} parent=1 // pred_fallthru
      _
    %v28 = vld [vmem:[#allocation4] sm:$0xff]
    %v29 = vld [vmem:[#allocation4 + $0x18] sm:$0xff]
    %s30 = scalar_lea.vmem [#allocation4], 8
    %v31 = vld [vmem:[%s30] sm:$0xff]
    %v32 = vld [vmem:[%s30 + $0x18] sm:$0xff]
    %s33 = scalar_lea.vmem [#allocation4], 16
    %v34 = vld [vmem:[%s33] sm:$0xff]
    %v35 = vld [vmem:[%s33 + $0x18] sm:$0xff]
    %s36 = sld [smem:[#allocation3]]
    %v37 = vstv %s36
    %v38 = vmul.f32 %v37, %v28
    %v39 = vmul.f32 %v37, %v29
    %s40 = sld [smem:[#allocation3 + $0x1]]
    %v41 = vstv %s40
    %v42 = vmul.f32 %v41, %v31
    %v43 = vmul.f32 %v41, %v32
    %v44 = vadd.f32 %v38, %v42
    %v45 = vadd.f32 %v39, %v43
    %s46 = sld [smem:[#allocation3 + $0x2]]
    %v47 = vstv %s46
    %v48 = vmul.f32 %v47, %v34
    %v49 = vmul.f32 %v47, %v35
    %v50 = vadd.f32 %v44, %v48
    %v51 = vadd.f32 %v45, %v49
    %52 = vst [vmem:[#allocation7] sm:$0xff] %v50
    %53 = vst [vmem:[#allocation7 + $0x18] sm:$0xff] %v51
    %s54 = sld [smem:[#allocation3 + $0x80]]
    %v55 = vstv %s54
    %v56 = vmul.f32 %v55, %v28
    %v57 = vmul.f32 %v55, %v29
    %s58 = sld [smem:[#allocation3 + $0x81]]
    %v59 = vstv %s58
    %v60 = vmul.f32 %v59, %v31
    %v61 = vmul.f32 %v59, %v32
    %v62 = vadd.f32 %v56, %v60
    %v63 = vadd.f32 %v57, %v61
    %s64 = sld [smem:[#allocation3 + $0x82]]
    %v65 = vstv %s64
    %v66 = vmul.f32 %v65, %v34
    %v67 = vmul.f32 %v65, %v35
    %v68 = vadd.f32 %v62, %v66
    %v69 = vadd.f32 %v63, %v67
    %s70 = scalar_lea.vmem [#allocation7], 8
    %71 = vst [vmem:[%s70] sm:$0xff] %v68
    %72 = vst [vmem:[%s70 + $0x18] sm:$0xff] %v69
    %s73 = sld [smem:[#allocation3 + $0x100]]
    %v74 = vstv %s73
    %v75 = vmul.f32 %v74, %v28
    %v76 = vmul.f32 %v74, %v29
    %s77 = sld [smem:[#allocation3 + $0x101]]
    %v78 = vstv %s77
    %v79 = vmul.f32 %v78, %v31
    %v80 = vmul.f32 %v78, %v32
    %v81 = vadd.f32 %v75, %v79
    %v82 = vadd.f32 %v76, %v80
    %s83 = sld [smem:[#allocation3 + $0x102]]
    %v84 = vstv %s83
    %v85 = vmul.f32 %v84, %v34
    %v86 = vmul.f32 %v84, %v35
    %v87 = vadd.f32 %v81, %v85
    %v88 = vadd.f32 %v82, %v86
    %s89 = scalar_lea.vmem [#allocation7], 16
    %90 = vst [vmem:[%s89] sm:$0xff] %v87
    %91 = vst [vmem:[%s89 + $0x18] sm:$0xff] %v88
    // Predicated region
    $region10: #{tpu_custom_call.1} parent=1 // pred_check
      _
    $region11: #{tpu_custom_call.1} parent=1 // pred_check_branch
      %93 = sbr.rel (0) target = $region13
    $region12: #{tpu_custom_call.1} parent=1 // pred_region
      %s95 = ssub.s32 768, 768
      %96 = vsyncadd [#allocation6], %s95
      %s97 = sshll.u32 [#allocation7], 4
      %s98 = int_to_ptr.vmem [resolvable:$true] %s97
      %103 = dma.vmem_to_hbm [thread:$0]  %s98, 768, %s2, [#allocation6], 128, 128, 8
    $region13: #{tpu_custom_call.1} parent=1 // pred_fallthru
      _
    // Predicated region
    $region14: #{tpu_custom_call.1} parent=1 // pred_check
      _
    $region15: #{tpu_custom_call.1} parent=1 // pred_check_branch
      %105 = sbr.rel (0) target = $region17
    $region16: #{tpu_custom_call.1} parent=1 // pred_region
      %106 = dma.done [#allocation6], 768
    $region17: #{tpu_custom_call.1} parent=1 // pred_fallthru
      _
    %107 = vsyncpa [#allocation5], 1
    %108 = vsyncpa [#allocation6], 1

</llo_original>
